<compile_context>
chip_gen: v7x
topology: tpu7x:2x2x1
jax: 0.10.0
libtpu: 0.0.40
codegen_flags: <defaults>
</compile_context>

<pallas_src>
import jax
import jax.numpy as jnp
from jax.experimental import pallas as pl
from jax.experimental.pallas import tpu as pltpu

NEG_SLOPE = 0.01  # nn.LeakyReLU default negative_slope


def _leaky(x):
    return jnp.where(x > 0, x, NEG_SLOPE * x)


# -----------------------------------------------------------------------------
# Host-side weight re-packing (tiny; folded into the jitted forward graph)
# -----------------------------------------------------------------------------

def _banded_conv_weights(w, W):
    """(3, 3, Cin, Cout) conv weight -> (3, W*Cin, W*Cout) banded matmul weights.

    band[kh][j*Cin + ci, w*Cout + co] = w[kh, j - w + 1, ci, co] inside the 3-tap
    band (zero elsewhere), so  out[h] = sum_kh padH_rows[h + kh] @ band[kh]
    implements a 3x3 'same' conv with the W-padding folded into the band.
    """
    _, _, cin, cout = w.shape
    band = jnp.zeros((3, W, cin, W, cout), w.dtype)
    for kw in range(3):
        # ones at (j, w) with j = w + kw - 1  <=>  diagonal k = 1 - kw
        e = jnp.eye(W, W, k=1 - kw, dtype=w.dtype)
        band = band + e[None, :, None, :, None] * w[:, kw][:, None, :, None, :]
    return band.reshape(3, W * cin, W * cout)


def _blockdiag_skip_weights(ws, W):
    """(Cin, Cout) 1x1-conv weight -> (W*Cin, W*Cout) block-diagonal matmul weight."""
    cin, cout = ws.shape
    e = jnp.eye(W, dtype=ws.dtype)
    return (e[:, None, :, None] * ws[None, :, None, :]).reshape(W * cin, W * cout)


# -----------------------------------------------------------------------------
# Fused kernel
# -----------------------------------------------------------------------------

def _banded_conv3x3(padf_ref, band_ref, H):
    """3x3 'same' conv as 3 wide-K MXU matmuls.

    padf_ref : (H+2, W*Cin) bf16 VMEM scratch, rows 0 and H+1 are zero (H padding).
    band_ref : (3, W*Cin, W*Cout) bf16 banded weights (W padding folded in).
    Returns an (H, W*Cout) f32 accumulator (bias NOT included; added in epilogue).
    """
    acc = None
    for kh in range(3):
        slab = padf_ref[kh:kh + H, :]            # contiguous sublane-offset slice
        part = jnp.dot(slab, band_ref[kh], preferred_element_type=jnp.float32)
        acc = part if acc is None else acc + part
    return acc


def _make_fused_kernel(has_skip):
    def kernel(*args):
        if has_skip:
            (x_ref, band1_ref, b1_ref, band2_ref, b2_ref, wsbd_ref, bs_ref,
             o_ref, xpad_s, hpad_s) = args
        else:
            (x_ref, band1_ref, b1_ref, band2_ref, b2_ref,
             o_ref, xpad_s, hpad_s) = args

        H = o_ref.shape[1]

        # -- zero-pad x along H into VMEM scratch (no HBM-side jnp.pad) ----------
        xpad_s[...] = jnp.zeros_like(xpad_s)
        xpad_s[1:H + 1, :] = x_ref[0].astype(jnp.bfloat16)

        # -- conv1 (3x3) + bias + LeakyReLU, kept entirely in VMEM ---------------
        h = _leaky(_banded_conv3x3(xpad_s, band1_ref, H) + b1_ref[...])  # f32

        # -- zero-pad h along H in VMEM (h never touches HBM) --------------------
        hpad_s[...] = jnp.zeros_like(hpad_s)
        hpad_s[1:H + 1, :] = h.astype(jnp.bfloat16)

        # -- conv2 (3x3) + bias + LeakyReLU ---------------------------------------
        out = _leaky(_banded_conv3x3(hpad_s, band2_ref, H) + b2_ref[...])  # f32

        # -- skip path: x already resident in VMEM (no second HBM read of x) -----
        if has_skip:
            skip = jnp.dot(x_ref[0].astype(jnp.bfloat16), wsbd_ref[...],
                           preferred_element_type=jnp.float32) + bs_ref[...]
        else:
            skip = x_ref[0]                      # identity skip, exact f32

        # lane-dense (H, W*Cout) output block -> unmasked stores
        o_ref[0] = (out + skip).astype(o_ref.dtype)

    return kernel


# -----------------------------------------------------------------------------
# Wrapper
# -----------------------------------------------------------------------------

def _forward(x_nchw, w1, b1, w2, b2, ws, bs):
    N, cin, H, W = x_nchw.shape
    cout = w1.shape[-1]
    has_skip = ws is not None

    # NCHW -> NHWC -> lane-folded (N, H, W*Cin): channel folded into the lane dim.
    x = jnp.transpose(x_nchw, (0, 2, 3, 1)).reshape(N, H, W * cin)

    band1 = _banded_conv_weights(w1, W).astype(jnp.bfloat16)
    band2 = _banded_conv_weights(w2, W).astype(jnp.bfloat16)
    b1_t = jnp.tile(b1, (1, W))                  # (1, W*Cout) f32
    b2_t = jnp.tile(b2, (1, W))

    args = [x, band1, b1_t, band2, b2_t]
    in_specs = [
        pl.BlockSpec((1, H, W * cin), lambda n: (n, 0, 0)),
        pl.BlockSpec((3, W * cin, W * cout), lambda n: (0, 0, 0)),
        pl.BlockSpec((1, W * cout), lambda n: (0, 0)),
        pl.BlockSpec((3, W * cout, W * cout), lambda n: (0, 0, 0)),
        pl.BlockSpec((1, W * cout), lambda n: (0, 0)),
    ]
    if has_skip:
        wsbd = _blockdiag_skip_weights(ws, W).astype(jnp.bfloat16)
        bs_t = jnp.tile(bs, (1, W))
        args += [wsbd, bs_t]
        in_specs += [
            pl.BlockSpec((W * cin, W * cout), lambda n: (0, 0)),
            pl.BlockSpec((1, W * cout), lambda n: (0, 0)),
        ]

    out = pl.pallas_call(
        _make_fused_kernel(has_skip),
        out_shape=jax.ShapeDtypeStruct((N, H, W * cout), x_nchw.dtype),
        grid=(N,),
        in_specs=in_specs,
        out_specs=pl.BlockSpec((1, H, W * cout), lambda n: (n, 0, 0)),
        scratch_shapes=[
            pltpu.VMEM((H + 2, W * cin), jnp.bfloat16),   # padded x (MXU operand)
            pltpu.VMEM((H + 2, W * cout), jnp.bfloat16),  # padded h (MXU operand)
        ],
        compiler_params=pltpu.CompilerParams(
            dimension_semantics=("parallel",),
            vmem_limit_bytes=32 * 1024 * 1024,
        ),
    )(*args)

    # (N, H, W*Cout) -> NCHW
    return jnp.transpose(out.reshape(N, H, W, cout), (0, 3, 1, 2))


residual_block_forward = jax.jit(_forward)


class ResidualBlockPallas:
    """JAX/Pallas equivalent of the PyTorch ResidualBlock (PyTorch-style uniform init)."""

    def __init__(self, in_ch: int, out_ch: int, key):
        k1, k2, k3, k4, k5, k6 = jax.random.split(key, 6)
        s1 = 1.0 / (in_ch * 9) ** 0.5
        self.w1 = jax.random.uniform(k1, (3, 3, in_ch, out_ch), jnp.float32, -s1, s1)
        self.b1 = jax.random.uniform(k2, (1, out_ch), jnp.float32, -s1, s1)
        s2 = 1.0 / (out_ch * 9) ** 0.5
        self.w2 = jax.random.uniform(k3, (3, 3, out_ch, out_ch), jnp.float32, -s2, s2)
        self.b2 = jax.random.uniform(k4, (1, out_ch), jnp.float32, -s2, s2)
        if in_ch != out_ch:
            s3 = 1.0 / in_ch ** 0.5
            self.ws = jax.random.uniform(k5, (in_ch, out_ch), jnp.float32, -s3, s3)
            self.bs = jax.random.uniform(k6, (1, out_ch), jnp.float32, -s3, s3)
        else:
            self.ws = None
            self.bs = None

    def __call__(self, x_nchw):
        return residual_block_forward(x_nchw, self.w1, self.b1, self.w2, self.b2,
                                      self.ws, self.bs)


def _residual_block_reference(blk: ResidualBlockPallas, x_nchw):
    """Pure-JAX reference (lax.conv, f32) for numerical validation."""
    x = jnp.transpose(x_nchw, (0, 2, 3, 1))

    def conv(x, w, b, pad):
        y = jax.lax.conv_general_dilated(
            x, w, (1, 1), pad,
            dimension_numbers=("NHWC", "HWIO", "NHWC"),
            precision=jax.lax.Precision.HIGHEST)
        return y + b.reshape(1, 1, 1, -1)

    h = _leaky(conv(x, blk.w1, blk.b1, ((1, 1), (1, 1))))
    out = _leaky(conv(h, blk.w2, blk.b2, ((1, 1), (1, 1))))
    if blk.ws is not None:
        ident = conv(x, blk.ws.reshape(1, 1, *blk.ws.shape), blk.bs, ((0, 0), (0, 0)))
    else:
        ident = x
    return jnp.transpose(out + ident, (0, 3, 1, 2))


if __name__ == "__main__":
    key = jax.random.PRNGKey(0)
    kx1, kb1, kx2, kb2 = jax.random.split(key, 4)

    # Tolerance reflects bf16 MXU operands with f32 accumulation.
    ATOL = RTOL = 2e-2

    # Case 1: in_ch != out_ch (1x1-conv skip path), NCHW input like PyTorch.
    x1 = jax.random.normal(kx1, (2, 4, 16, 16), jnp.float32)
    blk1 = ResidualBlockPallas(4, 8, kb1)
    y1 = jax.block_until_ready(blk1(x1))
    y1_ref = _residual_block_reference(blk1, x1)
    assert y1.shape == (2, 8, 16, 16)
    assert jnp.allclose(y1, y1_ref, atol=ATOL, rtol=RTOL), float(jnp.max(jnp.abs(y1 - y1_ref)))

    # Case 2: in_ch == out_ch (identity skip path).
    x2 = jax.random.normal(kx2, (2, 8, 16, 16), jnp.float32)
    blk2 = ResidualBlockPallas(8, 8, kb2)
    y2 = jax.block_until_ready(blk2(x2))
    y2_ref = _residual_block_reference(blk2, x2)
    assert y2.shape == (2, 8, 16, 16)
    assert jnp.allclose(y2, y2_ref, atol=ATOL, rtol=RTOL), float(jnp.max(jnp.abs(y2 - y2_ref)))

    print("KERNEL_OK")
</pallas_src>

<mosaic_0001>
module attributes {stable_mosaic.version = 11 : i64} {
  func.func @kernel(%arg0: i32, %arg1: memref<1x16x64xf32, #tpu.memory_space<vmem>>, %arg2: memref<3x64x128xbf16, #tpu.memory_space<vmem>>, %arg3: memref<1x128xf32, #tpu.memory_space<vmem>>, %arg4: memref<3x128x128xbf16, #tpu.memory_space<vmem>>, %arg5: memref<1x128xf32, #tpu.memory_space<vmem>>, %arg6: memref<64x128xbf16, #tpu.memory_space<vmem>>, %arg7: memref<1x128xf32, #tpu.memory_space<vmem>>, %arg8: memref<1x16x128xf32, #tpu.memory_space<vmem>>, %arg9: memref<18x64xbf16, #tpu.memory_space<vmem>>, %arg10: memref<18x128xbf16, #tpu.memory_space<vmem>>) attributes {dimension_semantics = [#tpu.dimension_semantics<parallel>], iteration_bounds = array<i64: 2>, scalar_prefetch = 0 : i64, scratch_operands = 2 : i64, tpu.core_type = #tpu.core_type<tc>, window_params = [{transform_indices = @transform_0, window_bounds = array<i64: 1, 16, 64>}, {pipeline_mode = #tpu.pipeline_mode<synchronous>, transform_indices = @transform_1, window_bounds = array<i64: 3, 64, 128>}, {pipeline_mode = #tpu.pipeline_mode<synchronous>, transform_indices = @transform_2, window_bounds = array<i64: 1, 128>}, {pipeline_mode = #tpu.pipeline_mode<synchronous>, transform_indices = @transform_3, window_bounds = array<i64: 3, 128, 128>}, {pipeline_mode = #tpu.pipeline_mode<synchronous>, transform_indices = @transform_4, window_bounds = array<i64: 1, 128>}, {pipeline_mode = #tpu.pipeline_mode<synchronous>, transform_indices = @transform_5, window_bounds = array<i64: 64, 128>}, {pipeline_mode = #tpu.pipeline_mode<synchronous>, transform_indices = @transform_6, window_bounds = array<i64: 1, 128>}, {transform_indices = @transform_7, window_bounds = array<i64: 1, 16, 128>}]} {
    %cst = arith.constant 0.000000e+00 : bf16
    %0 = vector.broadcast %cst : bf16 to vector<18x64xbf16>
    %c0 = arith.constant 0 : index
    %c0_0 = arith.constant 0 : index
    %1 = vector.load %arg9[%c0, %c0_0] : memref<18x64xbf16, #tpu.memory_space<vmem>>, vector<18x64xbf16>
    tpu.vector_store %arg9[%c0, %c0_0], %0 {strides = array<i32>} : memref<18x64xbf16, #tpu.memory_space<vmem>>, vector<18x64xbf16>,
    %c0_1 = arith.constant 0 : index
    %c0_2 = arith.constant 0 : index
    %c0_3 = arith.constant 0 : index
    %2 = vector.load %arg1[%c0_1, %c0_2, %c0_3] : memref<1x16x64xf32, #tpu.memory_space<vmem>>, vector<1x16x64xf32>
    %3 = vector.shape_cast %2 : vector<1x16x64xf32> to vector<16x64xf32>
    %4 = arith.truncf %3 : vector<16x64xf32> to vector<16x64xbf16>
    %c1 = arith.constant 1 : index
    %c0_4 = arith.constant 0 : index
    %5 = vector.load %arg9[%c1, %c0_4] : memref<18x64xbf16, #tpu.memory_space<vmem>>, vector<16x64xbf16>
    tpu.vector_store %arg9[%c1, %c0_4], %4 {strides = array<i32>} : memref<18x64xbf16, #tpu.memory_space<vmem>>, vector<16x64xbf16>,
    %c0_5 = arith.constant 0 : index
    %c0_6 = arith.constant 0 : index
    %6 = vector.load %arg9[%c0_5, %c0_6] : memref<18x64xbf16, #tpu.memory_space<vmem>>, vector<16x64xbf16>
    %c0_7 = arith.constant 0 : index
    %c0_8 = arith.constant 0 : index
    %c0_9 = arith.constant 0 : index
    %7 = vector.load %arg2[%c0_7, %c0_8, %c0_9] : memref<3x64x128xbf16, #tpu.memory_space<vmem>>, vector<1x64x128xbf16>
    %8 = vector.shape_cast %7 : vector<1x64x128xbf16> to vector<64x128xbf16>
    %cst_10 = arith.constant dense<0.000000e+00> : vector<16x128xf32>
    %9 = tpu.matmul %6, %8, %cst_10 {dimension_numbers = #tpu.dot_dimension_numbers<[1], [0], [0], [1], [0, 0, 1, 1], [], []>} : vector<16x64xbf16>, vector<64x128xbf16>, vector<16x128xf32> -> vector<16x128xf32>
    %c1_11 = arith.constant 1 : index
    %c0_12 = arith.constant 0 : index
    %10 = vector.load %arg9[%c1_11, %c0_12] : memref<18x64xbf16, #tpu.memory_space<vmem>>, vector<16x64xbf16>
    %c1_13 = arith.constant 1 : index
    %c0_14 = arith.constant 0 : index
    %c0_15 = arith.constant 0 : index
    %11 = vector.load %arg2[%c1_13, %c0_14, %c0_15] : memref<3x64x128xbf16, #tpu.memory_space<vmem>>, vector<1x64x128xbf16>
    %12 = vector.shape_cast %11 : vector<1x64x128xbf16> to vector<64x128xbf16>
    %cst_16 = arith.constant dense<0.000000e+00> : vector<16x128xf32>
    %13 = tpu.matmul %10, %12, %cst_16 {dimension_numbers = #tpu.dot_dimension_numbers<[1], [0], [0], [1], [0, 0, 1, 1], [], []>} : vector<16x64xbf16>, vector<64x128xbf16>, vector<16x128xf32> -> vector<16x128xf32>
    %14 = arith.addf %9, %13 : vector<16x128xf32>
    %c2 = arith.constant 2 : index
    %c0_17 = arith.constant 0 : index
    %15 = vector.load %arg9[%c2, %c0_17] : memref<18x64xbf16, #tpu.memory_space<vmem>>, vector<16x64xbf16>
    %c2_18 = arith.constant 2 : index
    %c0_19 = arith.constant 0 : index
    %c0_20 = arith.constant 0 : index
    %16 = vector.load %arg2[%c2_18, %c0_19, %c0_20] : memref<3x64x128xbf16, #tpu.memory_space<vmem>>, vector<1x64x128xbf16>
    %17 = vector.shape_cast %16 : vector<1x64x128xbf16> to vector<64x128xbf16>
    %cst_21 = arith.constant dense<0.000000e+00> : vector<16x128xf32>
    %18 = tpu.matmul %15, %17, %cst_21 {dimension_numbers = #tpu.dot_dimension_numbers<[1], [0], [0], [1], [0, 0, 1, 1], [], []>} : vector<16x64xbf16>, vector<64x128xbf16>, vector<16x128xf32> -> vector<16x128xf32>
    %19 = arith.addf %14, %18 : vector<16x128xf32>
    %c0_22 = arith.constant 0 : index
    %c0_23 = arith.constant 0 : index
    %20 = vector.load %arg3[%c0_22, %c0_23] : memref<1x128xf32, #tpu.memory_space<vmem>>, vector<1x128xf32>
    %21 = vector.broadcast %20 : vector<1x128xf32> to vector<16x128xf32>
    %22 = arith.addf %19, %21 : vector<16x128xf32>
    %cst_24 = arith.constant 0.000000e+00 : f32
    %23 = vector.broadcast %cst_24 : f32 to vector<16x128xf32>
    %24 = arith.cmpf ogt, %22, %23 : vector<16x128xf32>
    %cst_25 = arith.constant 0.00999999977 : f32
    %25 = vector.broadcast %cst_25 : f32 to vector<16x128xf32>
    %26 = arith.mulf %25, %22 : vector<16x128xf32>
    %27 = arith.select %24, %22, %26 : vector<16x128xi1>, vector<16x128xf32>
    %cst_26 = arith.constant 0.000000e+00 : bf16
    %28 = vector.broadcast %cst_26 : bf16 to vector<18x128xbf16>
    %c0_27 = arith.constant 0 : index
    %c0_28 = arith.constant 0 : index
    %29 = vector.load %arg10[%c0_27, %c0_28] : memref<18x128xbf16, #tpu.memory_space<vmem>>, vector<18x128xbf16>
    tpu.vector_store %arg10[%c0_27, %c0_28], %28 {strides = array<i32>} : memref<18x128xbf16, #tpu.memory_space<vmem>>, vector<18x128xbf16>,
    %30 = arith.truncf %27 : vector<16x128xf32> to vector<16x128xbf16>
    %c1_29 = arith.constant 1 : index
    %c0_30 = arith.constant 0 : index
    %31 = vector.load %arg10[%c1_29, %c0_30] : memref<18x128xbf16, #tpu.memory_space<vmem>>, vector<16x128xbf16>
    tpu.vector_store %arg10[%c1_29, %c0_30], %30 {strides = array<i32>} : memref<18x128xbf16, #tpu.memory_space<vmem>>, vector<16x128xbf16>,
    %c0_31 = arith.constant 0 : index
    %c0_32 = arith.constant 0 : index
    %32 = vector.load %arg10[%c0_31, %c0_32] : memref<18x128xbf16, #tpu.memory_space<vmem>>, vector<16x128xbf16>
    %c0_33 = arith.constant 0 : index
    %c0_34 = arith.constant 0 : index
    %c0_35 = arith.constant 0 : index
    %33 = vector.load %arg4[%c0_33, %c0_34, %c0_35] : memref<3x128x128xbf16, #tpu.memory_space<vmem>>, vector<1x128x128xbf16>
    %34 = vector.shape_cast %33 : vector<1x128x128xbf16> to vector<128x128xbf16>
    %cst_36 = arith.constant dense<0.000000e+00> : vector<16x128xf32>
    %35 = tpu.matmul %32, %34, %cst_36 {dimension_numbers = #tpu.dot_dimension_numbers<[1], [0], [0], [1], [0, 0, 1, 1], [], []>} : vector<16x128xbf16>, vector<128x128xbf16>, vector<16x128xf32> -> vector<16x128xf32>
    %c1_37 = arith.constant 1 : index
    %c0_38 = arith.constant 0 : index
    %36 = vector.load %arg10[%c1_37, %c0_38] : memref<18x128xbf16, #tpu.memory_space<vmem>>, vector<16x128xbf16>
    %c1_39 = arith.constant 1 : index
    %c0_40 = arith.constant 0 : index
    %c0_41 = arith.constant 0 : index
    %37 = vector.load %arg4[%c1_39, %c0_40, %c0_41] : memref<3x128x128xbf16, #tpu.memory_space<vmem>>, vector<1x128x128xbf16>
    %38 = vector.shape_cast %37 : vector<1x128x128xbf16> to vector<128x128xbf16>
    %cst_42 = arith.constant dense<0.000000e+00> : vector<16x128xf32>
    %39 = tpu.matmul %36, %38, %cst_42 {dimension_numbers = #tpu.dot_dimension_numbers<[1], [0], [0], [1], [0, 0, 1, 1], [], []>} : vector<16x128xbf16>, vector<128x128xbf16>, vector<16x128xf32> -> vector<16x128xf32>
    %40 = arith.addf %35, %39 : vector<16x128xf32>
    %c2_43 = arith.constant 2 : index
    %c0_44 = arith.constant 0 : index
    %41 = vector.load %arg10[%c2_43, %c0_44] : memref<18x128xbf16, #tpu.memory_space<vmem>>, vector<16x128xbf16>
    %c2_45 = arith.constant 2 : index
    %c0_46 = arith.constant 0 : index
    %c0_47 = arith.constant 0 : index
    %42 = vector.load %arg4[%c2_45, %c0_46, %c0_47] : memref<3x128x128xbf16, #tpu.memory_space<vmem>>, vector<1x128x128xbf16>
    %43 = vector.shape_cast %42 : vector<1x128x128xbf16> to vector<128x128xbf16>
    %cst_48 = arith.constant dense<0.000000e+00> : vector<16x128xf32>
    %44 = tpu.matmul %41, %43, %cst_48 {dimension_numbers = #tpu.dot_dimension_numbers<[1], [0], [0], [1], [0, 0, 1, 1], [], []>} : vector<16x128xbf16>, vector<128x128xbf16>, vector<16x128xf32> -> vector<16x128xf32>
    %45 = arith.addf %40, %44 : vector<16x128xf32>
    %c0_49 = arith.constant 0 : index
    %c0_50 = arith.constant 0 : index
    %46 = vector.load %arg5[%c0_49, %c0_50] : memref<1x128xf32, #tpu.memory_space<vmem>>, vector<1x128xf32>
    %47 = vector.broadcast %46 : vector<1x128xf32> to vector<16x128xf32>
    %48 = arith.addf %45, %47 : vector<16x128xf32>
    %cst_51 = arith.constant 0.000000e+00 : f32
    %49 = vector.broadcast %cst_51 : f32 to vector<16x128xf32>
    %50 = arith.cmpf ogt, %48, %49 : vector<16x128xf32>
    %cst_52 = arith.constant 0.00999999977 : f32
    %51 = vector.broadcast %cst_52 : f32 to vector<16x128xf32>
    %52 = arith.mulf %51, %48 : vector<16x128xf32>
    %53 = arith.select %50, %48, %52 : vector<16x128xi1>, vector<16x128xf32>
    %c0_53 = arith.constant 0 : index
    %c0_54 = arith.constant 0 : index
    %c0_55 = arith.constant 0 : index
    %54 = vector.load %arg1[%c0_53, %c0_54, %c0_55] : memref<1x16x64xf32, #tpu.memory_space<vmem>>, vector<1x16x64xf32>
    %55 = vector.shape_cast %54 : vector<1x16x64xf32> to vector<16x64xf32>
    %56 = arith.truncf %55 : vector<16x64xf32> to vector<16x64xbf16>
    %c0_56 = arith.constant 0 : index
    %c0_57 = arith.constant 0 : index
    %57 = vector.load %arg6[%c0_56, %c0_57] : memref<64x128xbf16, #tpu.memory_space<vmem>>, vector<64x128xbf16>
    %cst_58 = arith.constant dense<0.000000e+00> : vector<16x128xf32>
    %58 = tpu.matmul %56, %57, %cst_58 {dimension_numbers = #tpu.dot_dimension_numbers<[1], [0], [0], [1], [0, 0, 1, 1], [], []>} : vector<16x64xbf16>, vector<64x128xbf16>, vector<16x128xf32> -> vector<16x128xf32>
    %c0_59 = arith.constant 0 : index
    %c0_60 = arith.constant 0 : index
    %59 = vector.load %arg7[%c0_59, %c0_60] : memref<1x128xf32, #tpu.memory_space<vmem>>, vector<1x128xf32>
    %60 = vector.broadcast %59 : vector<1x128xf32> to vector<16x128xf32>
    %61 = arith.addf %58, %60 : vector<16x128xf32>
    %62 = arith.addf %53, %61 : vector<16x128xf32>
    %c0_61 = arith.constant 0 : index
    %c0_62 = arith.constant 0 : index
    %c0_63 = arith.constant 0 : index
    %63 = vector.load %arg8[%c0_61, %c0_62, %c0_63] : memref<1x16x128xf32, #tpu.memory_space<vmem>>, vector<1x16x128xf32>
    %64 = vector.shape_cast %63 : vector<1x16x128xf32> to vector<16x128xf32>
    %65 = vector.shape_cast %62 : vector<16x128xf32> to vector<1x16x128xf32>
    tpu.vector_store %arg8[%c0_61, %c0_62, %c0_63], %65 {strides = array<i32>} : memref<1x16x128xf32, #tpu.memory_space<vmem>>, vector<1x16x128xf32>,
    return
  }
  func.func @transform_0(%arg0: i32) -> (i32, i32, i32) {
    %c0_i32 = arith.constant 0 : i32
    %c0_i32_0 = arith.constant 0 : i32
    %c0_i32_1 = arith.constant 0 : i32
    return %arg0, %c0_i32, %c0_i32_0 : i32, i32, i32
  }
  func.func @transform_1(%arg0: i32) -> (i32, i32, i32) {
    %c0_i32 = arith.constant 0 : i32
    %c0_i32_0 = arith.constant 0 : i32
    %c0_i32_1 = arith.constant 0 : i32
    %c0_i32_2 = arith.constant 0 : i32
    return %c0_i32, %c0_i32_0, %c0_i32_1 : i32, i32, i32
  }
  func.func @transform_2(%arg0: i32) -> (i32, i32) {
    %c0_i32 = arith.constant 0 : i32
    %c0_i32_0 = arith.constant 0 : i32
    %c0_i32_1 = arith.constant 0 : i32
    return %c0_i32, %c0_i32_0 : i32, i32
  }
  func.func @transform_3(%arg0: i32) -> (i32, i32, i32) {
    %c0_i32 = arith.constant 0 : i32
    %c0_i32_0 = arith.constant 0 : i32
    %c0_i32_1 = arith.constant 0 : i32
    %c0_i32_2 = arith.constant 0 : i32
    return %c0_i32, %c0_i32_0, %c0_i32_1 : i32, i32, i32
  }
  func.func @transform_4(%arg0: i32) -> (i32, i32) {
    %c0_i32 = arith.constant 0 : i32
    %c0_i32_0 = arith.constant 0 : i32
    %c0_i32_1 = arith.constant 0 : i32
    return %c0_i32, %c0_i32_0 : i32, i32
  }
  func.func @transform_5(%arg0: i32) -> (i32, i32) {
    %c0_i32 = arith.constant 0 : i32
    %c0_i32_0 = arith.constant 0 : i32
    %c0_i32_1 = arith.constant 0 : i32
    return %c0_i32, %c0_i32_0 : i32, i32
  }
  func.func @transform_6(%arg0: i32) -> (i32, i32) {
    %c0_i32 = arith.constant 0 : i32
    %c0_i32_0 = arith.constant 0 : i32
    %c0_i32_1 = arith.constant 0 : i32
    return %c0_i32, %c0_i32_0 : i32, i32
  }
  func.func @transform_7(%arg0: i32) -> (i32, i32, i32) {
    %c0_i32 = arith.constant 0 : i32
    %c0_i32_0 = arith.constant 0 : i32
    %c0_i32_1 = arith.constant 0 : i32
    return %arg0, %c0_i32, %c0_i32_0 : i32, i32, i32
  }
}

</mosaic_0001>

<llo_original>
// kernel: _forward.1
$region0: #{_forward.1}
  #allocation0 [shape = 'u32[]', space=smem, size = 0x4, offset = 0x4, fixed_abs, tag = 'smem constant byte address 0x4 - core index']
  #allocation1 [shape = 'u32[144,128]{1,0:T(1,128)}', space=vmem, size = 0x12000, scoped, tag = 'internal scratch']
  #allocation2 [shape = 'bf16[18,64]{1,0:T(8,128)(2,1)}', space=vmem, size = 0x1800, scoped, tag = 'scratch operand']
  #allocation3 [shape = 'bf16[18,128]{1,0:T(8,128)(2,1)}', space=vmem, size = 0x1800, scoped, tag = 'scratch operand']
  %s0 = inlined_call_operand.vmem [shape: f32[2,16,64], index: 0, kind: input, shape index: {}]
  %s1 = inlined_call_operand.vmem [shape: bf16[3,64,128], index: 1, kind: input, shape index: {}]
  %s2 = inlined_call_operand.vmem [shape: f32[1,128], index: 2, kind: input, shape index: {}]
  %s3 = inlined_call_operand.vmem [shape: bf16[3,128,128], index: 3, kind: input, shape index: {}]
  %s4 = inlined_call_operand.vmem [shape: f32[1,128], index: 4, kind: input, shape index: {}]
  %s5 = inlined_call_operand.vmem [shape: bf16[64,128], index: 5, kind: input, shape index: {}]
  %s6 = inlined_call_operand.vmem [shape: f32[1,128], index: 6, kind: input, shape index: {}]
  %s7 = inlined_call_operand.vmem [shape: f32[2,16,128], index: 7, kind: output, shape index: {}]
  %s8 = sld [smem:[#allocation0]]
  $region61: #{_forward.1} parent=0
    _
  %s10 = ssub.s32 1, %s8
  %s11 = scalar_select 0, %s10, %s8
  loop: start=0, step=1, limit=4
  $region2: #{_forward.1} parent=0 // loop_pre_header
    _
  $region3: #{_forward.1} parent=0 // loop_header
    %s13 = sphi 0, %s17
    %p14 = scmp.ge.s32.totalorder %s13, 4
    %s23 = sphi 0, %s25
    %s26 = sphi 0, %s23
    %s27 = sphi 0, %s26
    %s43 = sphi 0, %s27
    %s47 = sphi 0, %s47
    %s49 = sphi 0, %s47
    %s50 = sphi 0, %s49
    %s64 = sphi 0, %s50
    %s68 = sphi 0, %s68
    %s70 = sphi 0, %s68
    %s71 = sphi 0, %s70
    %s85 = sphi 0, %s71
    %s89 = sphi 0, %s89
    %s91 = sphi 0, %s89
    %s92 = sphi 0, %s91
    %s106 = sphi 0, %s92
    %s110 = sphi 0, %s110
    %s112 = sphi 0, %s110
    %s113 = sphi 0, %s112
    %s127 = sphi 0, %s113
    %s131 = sphi 0, %s131
    %s133 = sphi 0, %s131
    %s134 = sphi 0, %s133
    %s148 = sphi 0, %s134
    %s152 = sphi 0, %s152
    %s154 = sphi 0, %s152
    %s155 = sphi 0, %s154
    %s169 = sphi 0, %s155
    %s175 = sphi 0, %s177
    %s178 = sphi 0, %s175
    %s179 = sphi 0, %s178
    %s195 = sphi 0, %s179
  $region4: #{_forward.1} parent=0 // loop_header_branch
    %16 = sbr.rel (%p14) target = $region8
  $region5: #{_forward.1} parent=0 // loop_body
    %s18 = ssub.s32 %s13, 1
    %s19 = ssub.s32 %s13, 2
    %s20 = sadd.s32 %s13, 1
    %s21 = ssub.s32 %s13, %s20
    %p22 = scmp.eq.s32.totalorder %s21, 0
    %s24 = sadd.s32 %s23, 1
    %s25 = scalar_select %p22, %s23, %s24
    %p28 = pneg %p22
    %p29 = scmp.eq.s32.totalorder %s13, 1
    %p30 = por %p28, %p29
    %p31 = scmp.ne.s32.totalorder %s23, %s26
    %p32 = scmp.eq.s32.totalorder %s13, 0
    %p33 = por %p31, %p32
    %p34 = scmp.ne.s32.totalorder %s23, %s26
    %p35 = scmp.eq.s32.totalorder %s18, 1
    %p36 = por %p34, %p35
    %p37 = scmp.ne.s32.totalorder %s26, %s27
    %p38 = scmp.eq.s32.totalorder %s18, 0
    %p39 = por %p37, %p38
    %p40 = scmp.ne.s32.totalorder %s26, %s27
    %p41 = scmp.eq.s32.totalorder %s19, 1
    %p42 = por %p40, %p41
    %p44 = scmp.ne.s32.totalorder %s27, %s43
    %p45 = scmp.eq.s32.totalorder %s19, 0
    %p46 = por %p44, %p45
    %s48 = sadd.s32 %s47, 1
    %p51 = scmp.eq.s32.totalorder %s13, 1
    %p52 = scmp.ne.s32.totalorder %s47, %s49
    %p53 = scmp.eq.s32.totalorder %s13, 0
    %p54 = por %p52, %p53
    %p55 = scmp.ne.s32.totalorder %s47, %s49
    %p56 = scmp.eq.s32.totalorder %s18, 1
    %p57 = por %p55, %p56
    %p58 = scmp.ne.s32.totalorder %s49, %s50
    %p59 = scmp.eq.s32.totalorder %s18, 0
    %p60 = por %p58, %p59
    %p61 = scmp.ne.s32.totalorder %s49, %s50
    %p62 = scmp.eq.s32.totalorder %s19, 1
    %p63 = por %p61, %p62
    %p65 = scmp.ne.s32.totalorder %s50, %s64
    %p66 = scmp.eq.s32.totalorder %s19, 0
    %p67 = por %p65, %p66
    %s69 = sadd.s32 %s68, 1
    %p72 = scmp.eq.s32.totalorder %s13, 1
    %p73 = scmp.ne.s32.totalorder %s68, %s70
    %p74 = scmp.eq.s32.totalorder %s13, 0
    %p75 = por %p73, %p74
    %p76 = scmp.ne.s32.totalorder %s68, %s70
    %p77 = scmp.eq.s32.totalorder %s18, 1
    %p78 = por %p76, %p77
    %p79 = scmp.ne.s32.totalorder %s70, %s71
    %p80 = scmp.eq.s32.totalorder %s18, 0
    %p81 = por %p79, %p80
    %p82 = scmp.ne.s32.totalorder %s70, %s71
    %p83 = scmp.eq.s32.totalorder %s19, 1
    %p84 = por %p82, %p83
    %p86 = scmp.ne.s32.totalorder %s71, %s85
    %p87 = scmp.eq.s32.totalorder %s19, 0
    %p88 = por %p86, %p87
    %s90 = sadd.s32 %s89, 1
    %p93 = scmp.eq.s32.totalorder %s13, 1
    %p94 = scmp.ne.s32.totalorder %s89, %s91
    %p95 = scmp.eq.s32.totalorder %s13, 0
    %p96 = por %p94, %p95
    %p97 = scmp.ne.s32.totalorder %s89, %s91
    %p98 = scmp.eq.s32.totalorder %s18, 1
    %p99 = por %p97, %p98
    %p100 = scmp.ne.s32.totalorder %s91, %s92
    %p101 = scmp.eq.s32.totalorder %s18, 0
    %p102 = por %p100, %p101
    %p103 = scmp.ne.s32.totalorder %s91, %s92
    %p104 = scmp.eq.s32.totalorder %s19, 1
    %p105 = por %p103, %p104
    %p107 = scmp.ne.s32.totalorder %s92, %s106
    %p108 = scmp.eq.s32.totalorder %s19, 0
    %p109 = por %p107, %p108
    %s111 = sadd.s32 %s110, 1
    %p114 = scmp.eq.s32.totalorder %s13, 1
    %p115 = scmp.ne.s32.totalorder %s110, %s112
    %p116 = scmp.eq.s32.totalorder %s13, 0
    %p117 = por %p115, %p116
    %p118 = scmp.ne.s32.totalorder %s110, %s112
    %p119 = scmp.eq.s32.totalorder %s18, 1
    %p120 = por %p118, %p119
    %p121 = scmp.ne.s32.totalorder %s112, %s113
    %p122 = scmp.eq.s32.totalorder %s18, 0
    %p123 = por %p121, %p122
    %p124 = scmp.ne.s32.totalorder %s112, %s113
    %p125 = scmp.eq.s32.totalorder %s19, 1
    %p126 = por %p124, %p125
    %p128 = scmp.ne.s32.totalorder %s113, %s127
    %p129 = scmp.eq.s32.totalorder %s19, 0
    %p130 = por %p128, %p129
    %s132 = sadd.s32 %s131, 1
    %p135 = scmp.eq.s32.totalorder %s13, 1
    %p136 = scmp.ne.s32.totalorder %s131, %s133
    %p137 = scmp.eq.s32.totalorder %s13, 0
    %p138 = por %p136, %p137
    %p139 = scmp.ne.s32.totalorder %s131, %s133
    %p140 = scmp.eq.s32.totalorder %s18, 1
    %p141 = por %p139, %p140
    %p142 = scmp.ne.s32.totalorder %s133, %s134
    %p143 = scmp.eq.s32.totalorder %s18, 0
    %p144 = por %p142, %p143
    %p145 = scmp.ne.s32.totalorder %s133, %s134
    %p146 = scmp.eq.s32.totalorder %s19, 1
    %p147 = por %p145, %p146
    %p149 = scmp.ne.s32.totalorder %s134, %s148
    %p150 = scmp.eq.s32.totalorder %s19, 0
    %p151 = por %p149, %p150
    %s153 = sadd.s32 %s152, 1
    %p156 = scmp.eq.s32.totalorder %s13, 1
    %p157 = scmp.ne.s32.totalorder %s152, %s154
    %p158 = scmp.eq.s32.totalorder %s13, 0
    %p159 = por %p157, %p158
    %p160 = scmp.ne.s32.totalorder %s152, %s154
    %p161 = scmp.eq.s32.totalorder %s18, 1
    %p162 = por %p160, %p161
    %p163 = scmp.ne.s32.totalorder %s154, %s155
    %p164 = scmp.eq.s32.totalorder %s18, 0
    %p165 = por %p163, %p164
    %p166 = scmp.ne.s32.totalorder %s154, %s155
    %p167 = scmp.eq.s32.totalorder %s19, 1
    %p168 = por %p166, %p167
    %p170 = scmp.ne.s32.totalorder %s155, %s169
    %p171 = scmp.eq.s32.totalorder %s19, 0
    %p172 = por %p170, %p171
    %s173 = ssub.s32 %s13, %s20
    %p174 = scmp.eq.s32.totalorder %s173, 0
    %s176 = sadd.s32 %s175, 1
    %s177 = scalar_select %p174, %s175, %s176
    %p180 = pneg %p174
    %p181 = scmp.eq.s32.totalorder %s13, 1
    %p182 = por %p180, %p181
    %p183 = scmp.ne.s32.totalorder %s175, %s178
    %p184 = scmp.eq.s32.totalorder %s13, 0
    %p185 = por %p183, %p184
    %p186 = scmp.ne.s32.totalorder %s175, %s178
    %p187 = scmp.eq.s32.totalorder %s18, 1
    %p188 = por %p186, %p187
    %p189 = scmp.ne.s32.totalorder %s178, %s179
    %p190 = scmp.eq.s32.totalorder %s18, 0
    %p191 = por %p189, %p190
    %p192 = scmp.ne.s32.totalorder %s178, %s179
    %p193 = scmp.eq.s32.totalorder %s19, 1
    %p194 = por %p192, %p193
    %p196 = scmp.ne.s32.totalorder %s179, %s195
    %p197 = scmp.eq.s32.totalorder %s19, 0
    %p198 = por %p196, %p197
    %p199 = scmp.le.s32.totalorder 1, %s13
    %p200 = scmp.lt.s32.totalorder %s13, 3
    %p201 = pnand %p199, %p200
    %p202 = pneg %p201
    // Predicated region
    $region9: #{_forward.1} parent=5 // pred_check
      _
    $region10: #{_forward.1} parent=5 // pred_check_branch
      %204 = sbr.rel (%p201) target = $region12
    $region11: #{_forward.1} parent=5 // pred_region
      %s205 = ssub.s32 %s13, 1
      // Predicated region
      $region13: #{_forward.1} parent=11 // pred_check
        %p206 = pneg %p60
      $region14: #{_forward.1} parent=11 // pred_check_branch
        %208 = sbr.rel (%p206) target = $region16
      $region15: #{_forward.1} parent=11 // pred_region
        _
      $region16: #{_forward.1} parent=11 // pred_fallthru
        _
      // Predicated region
      $region17: #{_forward.1} parent=11 // pred_check
        %p209 = pneg %p81
      $region18: #{_forward.1} parent=11 // pred_check_branch
        %211 = sbr.rel (%p209) target = $region20
      $region19: #{_forward.1} parent=11 // pred_region
        _
      $region20: #{_forward.1} parent=11 // pred_fallthru
        _
      // Predicated region
      $region21: #{_forward.1} parent=11 // pred_check
        %p212 = pneg %p102
      $region22: #{_forward.1} parent=11 // pred_check_branch
        %214 = sbr.rel (%p212) target = $region24
      $region23: #{_forward.1} parent=11 // pred_region
        _
      $region24: #{_forward.1} parent=11 // pred_fallthru
        _
      // Predicated region
      $region25: #{_forward.1} parent=11 // pred_check
        %p215 = pneg %p123
      $region26: #{_forward.1} parent=11 // pred_check_branch
        %217 = sbr.rel (%p215) target = $region28
      $region27: #{_forward.1} parent=11 // pred_region
        _
      $region28: #{_forward.1} parent=11 // pred_fallthru
        _
      // Predicated region
      $region29: #{_forward.1} parent=11 // pred_check
        %p218 = pneg %p144
      $region30: #{_forward.1} parent=11 // pred_check_branch
        %220 = sbr.rel (%p218) target = $region32
      $region31: #{_forward.1} parent=11 // pred_region
        _
      $region32: #{_forward.1} parent=11 // pred_fallthru
        _
      // Predicated region
      $region33: #{_forward.1} parent=11 // pred_check
        %p221 = pneg %p165
      $region34: #{_forward.1} parent=11 // pred_check_branch
        %223 = sbr.rel (%p221) target = $region36
      $region35: #{_forward.1} parent=11 // pred_region
        _
      $region36: #{_forward.1} parent=11 // pred_fallthru
        _
    $region12: #{_forward.1} parent=5 // pred_fallthru
      _
    %p224 = scmp.lt.s32.totalorder %s13, 2
    // Predicated region
    $region37: #{_forward.1} parent=5 // pred_check
      %p225 = pneg %p224
    $region38: #{_forward.1} parent=5 // pred_check_branch
      %227 = sbr.rel (%p225) target = $region40
    $region39: #{_forward.1} parent=5 // pred_region
      // Predicated region
      $region41: #{_forward.1} parent=39 // pred_check
        %p228 = pneg %p33
      $region42: #{_forward.1} parent=39 // pred_check_branch
        %230 = sbr.rel (%p228) target = $region44
      $region43: #{_forward.1} parent=39 // pred_region
        %p231 = scmp.lt.s32.totalorder %s13, 1
        %s232 = scalar_select %p231, %s13, 1
        %s233 = smul.addr %s232, 2
        %s234 = smul.addr %s233, 8
        %s235 = scalar_lea.vmem %s0, %s234
      $region44: #{_forward.1} parent=39 // pred_fallthru
        _
    $region40: #{_forward.1} parent=5 // pred_fallthru
      _
    %p236 = scmp.le.s32.totalorder 1, %s13
    %p237 = scmp.lt.s32.totalorder %s13, 3
    %p238 = pnand %p236, %p237
    %p239 = pneg %p238
    // Predicated region
    $region45: #{_forward.1} parent=5 // pred_check
      _
    $region46: #{_forward.1} parent=5 // pred_check_branch
      %241 = sbr.rel (%p238) target = $region48
    $region47: #{_forward.1} parent=5 // pred_region
      %s242 = ssub.s32 %s13, 1
      %p243 = scmp.lt.s32.totalorder %s18, 1
      %s244 = scalar_select %p243, %s18, 1
      %s245 = smul.addr %s244, 2
      %s246 = smul.addr %s245, 8
      %s247 = scalar_lea.vmem %s0, %s246
      %p248 = pneg %p39
      %p249 = pneg %p36
      %p250 = pneg %p60
      %p251 = pneg %p57
      %p252 = pneg %p81
      %p253 = pneg %p78
      %p254 = pneg %p102
      %p255 = pneg %p99
      %p256 = pneg %p123
      %p257 = pneg %p120
      %p258 = pneg %p144
      %p259 = pneg %p141
      %p260 = pneg %p165
      %p261 = pneg %p162
      %p262 = pneg %p191
      %p263 = pneg %p188
      %p264 = scmp.lt.s32.totalorder %s18, 1
      %s265 = scalar_select %p264, %s18, 1
      %s266 = smul.addr %s265, 2
      %s267 = smul.addr %s266, 8
      %s268 = scalar_lea.vmem %s7, %s267
      %p269 = scmp.lt.s32.totalorder %s18, 1
      %s270 = scalar_select %p269, %s18, 1
      %s271 = smul.addr %s270, 2
      %s272 = smul.addr %s271, 8
      %s273 = scalar_lea.vmem %s0, %s272
      %p274 = scmp.lt.s32.totalorder %s18, 1
      %s275 = scalar_select %p274, %s18, 1
      %s276 = smul.addr %s275, 2
      %s277 = smul.addr %s276, 8
      %s278 = scalar_lea.vmem %s7, %s277
      %vm280 = vcmask 519168
      %281 = vst.msk [vmem:[#allocation2] sm:$0xf] %vm280, 0
      %282 = vst.msk [vmem:[#allocation2 + $0x4] sm:$0xf] %vm280, 0
      %vm283 = vcmask 516096
      %284 = vst.msk [vmem:[#allocation2 + $0x8] sm:$0x1] %vm283, 0
      %v285 = vld [vmem:[%s273] sm:$0xff]
      %v286 = vld [vmem:[%s273 + $0x8] sm:$0xff]
      %v287 = vpack.c.bf16 %v286, %v285
      %v289 = vunpack.c.l.b16 %v287
      %v290 = vunpack.c.h.b16 %v287
      %v291 = vpack.c.b16 %v289, %v289
      %v292 = vpack.c.b16 %v290, %v290
      %vm293 = vsmask.f32 256
      %vm294 = vsmask.f32 4368
      %vm295 = vmor %vm293, %vm294
      %v297 = vshrl.u32 %v291, 16
      %v299 = vrot.slane %v297, 7
      %v300 = vshll.u32 %v291, 16
      %v302 = vor.u32 %v299, %v300
      %v303 = vrot.slane %v299, 4
      %v305 = vshrl.u32 %v292, 16
      %v307 = vrot.slane %v305, 7
      %v308 = vshll.u32 %v292, 16
      %v310 = vor.u32 %v307, %v308
      %v311 = vsel %vm295, %v303, %v310
      %v312 = vrot.slane %v307, 4
      %vm316 = vcmask 519168
      %vm317 = vsmask.f32 7938
      %vm318 = vmand %vm316, %vm317
      %v319 = vld [vmem:[#allocation2] sm:$0xf]
      %v320 = vsel %vm318, %v302, %v319
      %321 = vst [vmem:[#allocation2] sm:$0xf] %v320
      %322 = vst.msk [vmem:[#allocation2 + $0x4] sm:$0xf] %vm280, %v311
      %vm323 = vcmask 516096
      %vm324 = vmand %vm323, %vm293
      %v325 = vld [vmem:[#allocation2 + $0x8] sm:$0x1]
      %v326 = vsel %vm324, %v312, %v325
      %327 = vst [vmem:[#allocation2 + $0x8] sm:$0x1] %v326
      %v328 = vld [vmem:[#allocation2] sm:$0xf]
      %v329 = vld [vmem:[#allocation2 + $0x4] sm:$0xf]
      %v330 = vld [vmem:[%s1] sm:$0xf]
      %v331 = vld [vmem:[%s1 + $0x4] sm:$0xf]
      %v332 = vld [vmem:[%s1 + $0x8] sm:$0xf]
      %v333 = vld [vmem:[%s1 + $0xc] sm:$0xf]
      %v334 = vld [vmem:[%s1 + $0x10] sm:$0xf]
      %v335 = vld [vmem:[%s1 + $0x14] sm:$0xf]
      %v336 = vld [vmem:[%s1 + $0x18] sm:$0xf]
      %v337 = vld [vmem:[%s1 + $0x1c] sm:$0xf]
      %v338 = vld [vmem:[#allocation2 + $0x8] sm:$0x1]
      %s339 = scalar_lea.vmem %s1, 32
      %v340 = vld [vmem:[%s339] sm:$0xf]
      %v341 = vld [vmem:[%s339 + $0x4] sm:$0xf]
      %v342 = vld [vmem:[%s339 + $0x8] sm:$0xf]
      %v343 = vld [vmem:[%s339 + $0xc] sm:$0xf]
      %v344 = vld [vmem:[%s339 + $0x10] sm:$0xf]
      %v345 = vld [vmem:[%s339 + $0x14] sm:$0xf]
      %v346 = vld [vmem:[%s339 + $0x18] sm:$0xf]
      %v347 = vld [vmem:[%s339 + $0x1c] sm:$0xf]
      %v351 = vunpack.c.l.b16 %v328
      %v352 = vunpack.c.l.b16 %v329
      %v353 = vunpack.c.l.b16 %v338
      %v354 = vpack.c.b16 %v352, %v351
      %v355 = vpack.c.b16 %v353, %v353
      %vm356 = vsmask.f32 7424
      %v358 = vshrl.u32 %v354, 16
      %v360 = vshll.u32 %v354, 16
      %v362 = vrot.slane %v360, 1
      %v363 = vor.u32 %v358, %v362
      %v365 = vshll.u32 %v355, 16
      %v367 = vrot.slane %v365, 1
      %v368 = vsel %vm356, %v363, %v367
      %v377 = vunpack.c.l.b16 %v340
      %v378 = vunpack.c.l.b16 %v341
      %v379 = vunpack.c.l.b16 %v342
      %v380 = vunpack.c.l.b16 %v343
      %v381 = vunpack.c.l.b16 %v344
      %v382 = vunpack.c.l.b16 %v345
      %v383 = vunpack.c.l.b16 %v346
      %v384 = vunpack.c.l.b16 %v347
      %v385 = vpack.c.b16 %v378, %v377
      %v386 = vpack.c.b16 %v380, %v379
      %v387 = vpack.c.b16 %v382, %v381
      %v388 = vpack.c.b16 %v384, %v383
      %vm393 = vcmask 523264
      %v395 = vsel %vm393, %v368, 0
      %397 = vmatprep.subr.bf16.mxu0 0
      %398 = vmatpush1.bf16.msra.mxu0 %v385
      %399 = vmatprep.subr.bf16.mxu0 0
      %400 = vmatpush1.bf16.msra.mxu0 %v386
      %401 = vmatprep.subr.bf16.mxu0 0
      %402 = vmatpush1.bf16.msra.mxu0 %v387
      %403 = vmatprep.subr.bf16.mxu0 0
      %404 = vmatpush1.bf16.msra.mxu0 %v388
      %405 = vmatprep.subr.bf16.mxu0 0
      %406 = vmatpush1.bf16.msra.mxu0 0
      %407 = vmatprep.subr.bf16.mxu0 0
      %408 = vmatpush1.bf16.msra.mxu0 0
      %409 = vmatprep.subr.bf16.mxu0 0
      %410 = vmatpush1.bf16.msra.mxu0 0
      %411 = vmatprep.subr.bf16.mxu0 0
      %412 = vmatpush1.bf16.msra.mxu0 0
      %413 = vmatprep.subr.bf16.mxu0 0
      %414 = vmatpush1.bf16.msra.mxu0 0
      %415 = vmatprep.subr.bf16.mxu0 0
      %416 = vmatpush1.bf16.msra.mxu0 0
      %417 = vmatprep.subr.bf16.mxu0 0
      %418 = vmatpush1.bf16.msra.mxu0 0
      %419 = vmatprep.subr.bf16.mxu0 0
      %420 = vmatpush1.bf16.msra.mxu0 0
      %421 = vmatprep.subr.bf16.mxu0 0
      %422 = vmatpush1.bf16.msra.mxu0 0
      %423 = vmatprep.subr.bf16.mxu0 0
      %424 = vmatpush1.bf16.msra.mxu0 0
      %425 = vmatprep.subr.bf16.mxu0 0
      %426 = vmatpush1.bf16.msra.mxu0 0
      %427 = vmatprep.subr.bf16.mxu0 0
      %428 = vmatpush1.bf16.msra.mxu0 0
      %429 = vmatprep.mubr.bf16.mxu0 0
      %430 = vmatmul.mubr.bf16.gmra.mrb[0].mxu0 %v395
      %v431 = vpop.f32.mrb[0].mxu0
      %v432 = vadd.f32 0.0, %v431
      %v433 = vpop.f32.mrb[0].mxu0
      %v434 = vpop.f32.mrb[0].mxu0
      %v435 = vadd.f32 0.0, %v434
      %v436 = vpop.f32.mrb[0].mxu0
      %437 = vdwg.mxu0
      %v446 = vunpack.c.l.b16 %v330
      %v447 = vunpack.c.l.b16 %v331
      %v448 = vunpack.c.l.b16 %v332
      %v449 = vunpack.c.l.b16 %v333
      %v450 = vunpack.c.l.b16 %v334
      %v451 = vunpack.c.l.b16 %v335
      %v452 = vunpack.c.l.b16 %v336
      %v453 = vunpack.c.l.b16 %v337
      %v454 = vpack.c.b16 %v447, %v446
      %v455 = vpack.c.b16 %v449, %v448
      %v456 = vpack.c.b16 %v451, %v450
      %v457 = vpack.c.b16 %v453, %v452
      %v462 = vsel %vm393, %v354, 0
      %464 = vmatprep.subr.bf16.mxu0 0
      %465 = vmatpush1.bf16.msra.mxu0 %v454
      %466 = vmatprep.subr.bf16.mxu0 0
      %467 = vmatpush1.bf16.msra.mxu0 %v455
      %468 = vmatprep.subr.bf16.mxu0 0
      %469 = vmatpush1.bf16.msra.mxu0 %v456
      %470 = vmatprep.subr.bf16.mxu0 0
      %471 = vmatpush1.bf16.msra.mxu0 %v457
      %472 = vmatprep.subr.bf16.mxu0 0
      %473 = vmatpush1.bf16.msra.mxu0 0
      %474 = vmatprep.subr.bf16.mxu0 0
      %475 = vmatpush1.bf16.msra.mxu0 0
      %476 = vmatprep.subr.bf16.mxu0 0
      %477 = vmatpush1.bf16.msra.mxu0 0
      %478 = vmatprep.subr.bf16.mxu0 0
      %479 = vmatpush1.bf16.msra.mxu0 0
      %480 = vmatprep.subr.bf16.mxu0 0
      %481 = vmatpush1.bf16.msra.mxu0 0
      %482 = vmatprep.subr.bf16.mxu0 0
      %483 = vmatpush1.bf16.msra.mxu0 0
      %484 = vmatprep.subr.bf16.mxu0 0
      %485 = vmatpush1.bf16.msra.mxu0 0
      %486 = vmatprep.subr.bf16.mxu0 0
      %487 = vmatpush1.bf16.msra.mxu0 0
      %488 = vmatprep.subr.bf16.mxu0 0
      %489 = vmatpush1.bf16.msra.mxu0 0
      %490 = vmatprep.subr.bf16.mxu0 0
      %491 = vmatpush1.bf16.msra.mxu0 0
      %492 = vmatprep.subr.bf16.mxu0 0
      %493 = vmatpush1.bf16.msra.mxu0 0
      %494 = vmatprep.subr.bf16.mxu0 0
      %495 = vmatpush1.bf16.msra.mxu0 0
      %496 = vmatprep.mubr.bf16.mxu0 0
      %497 = vmatmul.mubr.bf16.gmra.mrb[0].mxu0 %v462
      %v498 = vpop.f32.mrb[0].mxu0
      %v499 = vadd.f32 %v432, %v498
      %v500 = vpop.f32.mrb[0].mxu0
      %v501 = vpop.f32.mrb[0].mxu0
      %v502 = vadd.f32 %v435, %v501
      %v503 = vpop.f32.mrb[0].mxu0
      %504 = vdwg.mxu0
      %v505 = vld [vmem:[#allocation2] sm:$0xe]
      %s506 = scalar_lea.vmem %s1, 64
      %v507 = vld [vmem:[%s506] sm:$0xf]
      %v508 = vld [vmem:[%s506 + $0x4] sm:$0xf]
      %v509 = vld [vmem:[%s506 + $0x8] sm:$0xf]
      %v510 = vld [vmem:[%s506 + $0xc] sm:$0xf]
      %v511 = vld [vmem:[%s506 + $0x10] sm:$0xf]
      %v512 = vld [vmem:[%s506 + $0x14] sm:$0xf]
      %v513 = vld [vmem:[%s506 + $0x18] sm:$0xf]
      %v514 = vld [vmem:[%s506 + $0x1c] sm:$0xf]
      %v516 = vunpack.c.l.b16 %v505
      %v517 = vpack.c.b16 %v352, %v516
      %vm518 = vcmask 1046528
      %v519 = vrot.slane %v517, 1
      %v520 = vrot.slane %v355, 1
      %v521 = vsel %vm518, %v519, %v520
      %v530 = vunpack.c.l.b16 %v507
      %v531 = vunpack.c.l.b16 %v508
      %v532 = vunpack.c.l.b16 %v509
      %v533 = vunpack.c.l.b16 %v510
      %v534 = vunpack.c.l.b16 %v511
      %v535 = vunpack.c.l.b16 %v512
      %v536 = vunpack.c.l.b16 %v513
      %v537 = vunpack.c.l.b16 %v514
      %v538 = vpack.c.b16 %v531, %v530
      %v539 = vpack.c.b16 %v533, %v532
      %v540 = vpack.c.b16 %v535, %v534
      %v541 = vpack.c.b16 %v537, %v536
      %v547 = vsel %vm393, %v521, 0
      %549 = vmatprep.subr.bf16.mxu0 0
      %550 = vmatpush1.bf16.msra.mxu0 %v538
      %551 = vmatprep.subr.bf16.mxu0 0
      %552 = vmatpush1.bf16.msra.mxu0 %v539
      %553 = vmatprep.subr.bf16.mxu0 0
      %554 = vmatpush1.bf16.msra.mxu0 %v540
      %555 = vmatprep.subr.bf16.mxu0 0
      %556 = vmatpush1.bf16.msra.mxu0 %v541
      %557 = vmatprep.subr.bf16.mxu0 0
      %558 = vmatpush1.bf16.msra.mxu0 0
      %559 = vmatprep.subr.bf16.mxu0 0
      %560 = vmatpush1.bf16.msra.mxu0 0
      %561 = vmatprep.subr.bf16.mxu0 0
      %562 = vmatpush1.bf16.msra.mxu0 0
      %563 = vmatprep.subr.bf16.mxu0 0
      %564 = vmatpush1.bf16.msra.mxu0 0
      %565 = vmatprep.subr.bf16.mxu0 0
      %566 = vmatpush1.bf16.msra.mxu0 0
      %567 = vmatprep.subr.bf16.mxu0 0
      %568 = vmatpush1.bf16.msra.mxu0 0
      %569 = vmatprep.subr.bf16.mxu0 0
      %570 = vmatpush1.bf16.msra.mxu0 0
      %571 = vmatprep.subr.bf16.mxu0 0
      %572 = vmatpush1.bf16.msra.mxu0 0
      %573 = vmatprep.subr.bf16.mxu0 0
      %574 = vmatpush1.bf16.msra.mxu0 0
      %575 = vmatprep.subr.bf16.mxu0 0
      %576 = vmatpush1.bf16.msra.mxu0 0
      %577 = vmatprep.subr.bf16.mxu0 0
      %578 = vmatpush1.bf16.msra.mxu0 0
      %579 = vmatprep.subr.bf16.mxu0 0
      %580 = vmatpush1.bf16.msra.mxu0 0
      %581 = vmatprep.mubr.bf16.mxu0 0
      %582 = vmatmul.mubr.bf16.gmra.mrb[0].mxu0 %v547
      %v583 = vpop.f32.mrb[0].mxu0
      %v584 = vadd.f32 0.0, %v583
      %v585 = vpop.f32.mrb[0].mxu0
      %v586 = vpop.f32.mrb[0].mxu0
      %v587 = vadd.f32 0.0, %v586
      %v588 = vpop.f32.mrb[0].mxu0
      %589 = vdwg.mxu0
      %v590 = vadd.f32 %v499, %v584
      %v591 = vadd.f32 %v502, %v587
      %v592 = vld [vmem:[%s2] sm:$0x1]
      %v594 = vlaneseq
      %v595 = vshrl.u32 %v594, 7
      %v596 = vsub.s32 0, %v595
      %v597 = vrot.slane %v592, %v596
      %v599 = vadd.f32 %v590, %v597
      %v600 = vadd.f32 %v591, %v597
      %vm601 = vcmp.gt.f32.partialorder %v599, 0.0
      %vm602 = vcmp.gt.f32.partialorder %v600, 0.0
      %v603 = vmul.f32 %v599, 0.01
      %v604 = vmul.f32 %v600, 0.01
      %v605 = vsel %vm601, %v599, %v603
      %v606 = vsel %vm602, %v600, %v604
      %607 = vst [vmem:[#allocation3] sm:$0xf] 0
      %608 = vst [vmem:[#allocation3 + $0x4] sm:$0xf] 0
      %609 = vst [vmem:[#allocation3 + $0x8] sm:$0x1] 0
      %v610 = vpack.c.bf16 %v606, %v605
      %v612 = vunpack.c.l.b16 %v610
      %v613 = vunpack.c.h.b16 %v610
      %v614 = vpack.c.b16 %v612, %v612
      %v615 = vpack.c.b16 %v613, %v613
      %v617 = vshrl.u32 %v614, 16
      %v619 = vrot.slane %v617, 7
      %v620 = vshll.u32 %v614, 16
      %v622 = vor.u32 %v619, %v620
      %v623 = vrot.slane %v619, 4
      %v625 = vshrl.u32 %v615, 16
      %v627 = vrot.slane %v625, 7
      %v628 = vshll.u32 %v615, 16
      %v630 = vor.u32 %v627, %v628
      %v631 = vsel %vm295, %v623, %v630
      %v632 = vrot.slane %v627, 4
      %vm636 = vcmask 1043456
      %vm637 = vmand %vm636, %vm317
      %v638 = vld [vmem:[#allocation3] sm:$0xf]
      %v639 = vsel %vm637, %v622, %v638
      %640 = vst [vmem:[#allocation3] sm:$0xf] %v639
      %641 = vst [vmem:[#allocation3 + $0x4] sm:$0xf] %v631
      %vm642 = vcmask 1040384
      %vm643 = vmand %vm642, %vm293
      %v644 = vld [vmem:[#allocation3 + $0x8] sm:$0x1]
      %v645 = vsel %vm643, %v632, %v644
      %646 = vst [vmem:[#allocation3 + $0x8] sm:$0x1] %v645
      %v647 = vld [vmem:[#allocation3] sm:$0xf]
      %v648 = vld [vmem:[#allocation3 + $0x4] sm:$0xf]
      %v649 = vld [vmem:[%s3] sm:$0xf]
      %v650 = vld [vmem:[%s3 + $0x4] sm:$0xf]
      %v651 = vld [vmem:[%s3 + $0x8] sm:$0xf]
      %v652 = vld [vmem:[%s3 + $0xc] sm:$0xf]
      %v653 = vld [vmem:[%s3 + $0x10] sm:$0xf]
      %v654 = vld [vmem:[%s3 + $0x14] sm:$0xf]
      %v655 = vld [vmem:[%s3 + $0x18] sm:$0xf]
      %v656 = vld [vmem:[%s3 + $0x1c] sm:$0xf]
      %v657 = vld [vmem:[%s3 + $0x20] sm:$0xf]
      %v658 = vld [vmem:[%s3 + $0x24] sm:$0xf]
      %v659 = vld [vmem:[%s3 + $0x28] sm:$0xf]
      %v660 = vld [vmem:[%s3 + $0x2c] sm:$0xf]
      %v661 = vld [vmem:[%s3 + $0x30] sm:$0xf]
      %v662 = vld [vmem:[%s3 + $0x34] sm:$0xf]
      %v663 = vld [vmem:[%s3 + $0x38] sm:$0xf]
      %v664 = vld [vmem:[%s3 + $0x3c] sm:$0xf]
      %v665 = vld [vmem:[#allocation3 + $0x8] sm:$0x1]
      %s666 = scalar_lea.vmem %s3, 64
      %v667 = vld [vmem:[%s666] sm:$0xf]
      %v668 = vld [vmem:[%s666 + $0x4] sm:$0xf]
      %v669 = vld [vmem:[%s666 + $0x8] sm:$0xf]
      %v670 = vld [vmem:[%s666 + $0xc] sm:$0xf]
      %v671 = vld [vmem:[%s666 + $0x10] sm:$0xf]
      %v672 = vld [vmem:[%s666 + $0x14] sm:$0xf]
      %v673 = vld [vmem:[%s666 + $0x18] sm:$0xf]
      %v674 = vld [vmem:[%s666 + $0x1c] sm:$0xf]
      %v675 = vld [vmem:[%s666 + $0x20] sm:$0xf]
      %v676 = vld [vmem:[%s666 + $0x24] sm:$0xf]
      %v677 = vld [vmem:[%s666 + $0x28] sm:$0xf]
      %v678 = vld [vmem:[%s666 + $0x2c] sm:$0xf]
      %v679 = vld [vmem:[%s666 + $0x30] sm:$0xf]
      %v680 = vld [vmem:[%s666 + $0x34] sm:$0xf]
      %v681 = vld [vmem:[%s666 + $0x38] sm:$0xf]
      %v682 = vld [vmem:[%s666 + $0x3c] sm:$0xf]
      %v686 = vunpack.c.l.b16 %v647
      %v687 = vunpack.c.l.b16 %v648
      %v688 = vunpack.c.l.b16 %v665
      %v689 = vpack.c.b16 %v687, %v686
      %v690 = vpack.c.b16 %v688, %v688
      %v692 = vshrl.u32 %v689, 16
      %v694 = vshll.u32 %v689, 16
      %v696 = vrot.slane %v694, 1
      %v697 = vor.u32 %v692, %v696
      %v699 = vshll.u32 %v690, 16
      %v701 = vrot.slane %v699, 1
      %v702 = vsel %vm356, %v697, %v701
      %v720 = vunpack.c.l.b16 %v667
      %v721 = vunpack.c.l.b16 %v668
      %v722 = vunpack.c.l.b16 %v669
      %v723 = vunpack.c.l.b16 %v670
      %v724 = vunpack.c.l.b16 %v671
      %v725 = vunpack.c.l.b16 %v672
      %v726 = vunpack.c.l.b16 %v673
      %v727 = vunpack.c.l.b16 %v674
      %v728 = vunpack.c.l.b16 %v675
      %v729 = vunpack.c.l.b16 %v676
      %v730 = vunpack.c.l.b16 %v677
      %v731 = vunpack.c.l.b16 %v678
      %v732 = vunpack.c.l.b16 %v679
      %v733 = vunpack.c.l.b16 %v680
      %v734 = vunpack.c.l.b16 %v681
      %v735 = vunpack.c.l.b16 %v682
      %v736 = vpack.c.b16 %v721, %v720
      %v737 = vpack.c.b16 %v723, %v722
      %v738 = vpack.c.b16 %v725, %v724
      %v739 = vpack.c.b16 %v727, %v726
      %v740 = vpack.c.b16 %v729, %v728
      %v741 = vpack.c.b16 %v731, %v730
      %v742 = vpack.c.b16 %v733, %v732
      %v743 = vpack.c.b16 %v735, %v734
      %752 = vmatprep.subr.bf16.mxu0 0
      %753 = vmatpush1.bf16.msra.mxu0 %v736
      %754 = vmatprep.subr.bf16.mxu0 0
      %755 = vmatpush1.bf16.msra.mxu0 %v737
      %756 = vmatprep.subr.bf16.mxu0 0
      %757 = vmatpush1.bf16.msra.mxu0 %v738
      %758 = vmatprep.subr.bf16.mxu0 0
      %759 = vmatpush1.bf16.msra.mxu0 %v739
      %760 = vmatprep.subr.bf16.mxu0 0
      %761 = vmatpush1.bf16.msra.mxu0 %v740
      %762 = vmatprep.subr.bf16.mxu0 0
      %763 = vmatpush1.bf16.msra.mxu0 %v741
      %764 = vmatprep.subr.bf16.mxu0 0
      %765 = vmatpush1.bf16.msra.mxu0 %v742
      %766 = vmatprep.subr.bf16.mxu0 0
      %767 = vmatpush1.bf16.msra.mxu0 %v743
      %768 = vmatprep.subr.bf16.mxu0 0
      %769 = vmatpush1.bf16.msra.mxu0 0
      %770 = vmatprep.subr.bf16.mxu0 0
      %771 = vmatpush1.bf16.msra.mxu0 0
      %772 = vmatprep.subr.bf16.mxu0 0
      %773 = vmatpush1.bf16.msra.mxu0 0
      %774 = vmatprep.subr.bf16.mxu0 0
      %775 = vmatpush1.bf16.msra.mxu0 0
      %776 = vmatprep.subr.bf16.mxu0 0
      %777 = vmatpush1.bf16.msra.mxu0 0
      %778 = vmatprep.subr.bf16.mxu0 0
      %779 = vmatpush1.bf16.msra.mxu0 0
      %780 = vmatprep.subr.bf16.mxu0 0
      %781 = vmatpush1.bf16.msra.mxu0 0
      %782 = vmatprep.subr.bf16.mxu0 0
      %783 = vmatpush1.bf16.msra.mxu0 0
      %784 = vmatprep.mubr.bf16.mxu0 0
      %785 = vmatmul.mubr.bf16.gmra.mrb[0].mxu0 %v702
      %v786 = vpop.f32.mrb[0].mxu0
      %v787 = vadd.f32 0.0, %v786
      %v788 = vpop.f32.mrb[0].mxu0
      %v789 = vpop.f32.mrb[0].mxu0
      %v790 = vadd.f32 0.0, %v789
      %v791 = vpop.f32.mrb[0].mxu0
      %792 = vdwg.mxu0
      %v810 = vunpack.c.l.b16 %v649
      %v811 = vunpack.c.l.b16 %v650
      %v812 = vunpack.c.l.b16 %v651
      %v813 = vunpack.c.l.b16 %v652
      %v814 = vunpack.c.l.b16 %v653
      %v815 = vunpack.c.l.b16 %v654
      %v816 = vunpack.c.l.b16 %v655
      %v817 = vunpack.c.l.b16 %v656
      %v818 = vunpack.c.l.b16 %v657
      %v819 = vunpack.c.l.b16 %v658
      %v820 = vunpack.c.l.b16 %v659
      %v821 = vunpack.c.l.b16 %v660
      %v822 = vunpack.c.l.b16 %v661
      %v823 = vunpack.c.l.b16 %v662
      %v824 = vunpack.c.l.b16 %v663
      %v825 = vunpack.c.l.b16 %v664
      %v826 = vpack.c.b16 %v811, %v810
      %v827 = vpack.c.b16 %v813, %v812
      %v828 = vpack.c.b16 %v815, %v814
      %v829 = vpack.c.b16 %v817, %v816
      %v830 = vpack.c.b16 %v819, %v818
      %v831 = vpack.c.b16 %v821, %v820
      %v832 = vpack.c.b16 %v823, %v822
      %v833 = vpack.c.b16 %v825, %v824
      %842 = vmatprep.subr.bf16.mxu0 0
      %843 = vmatpush1.bf16.msra.mxu0 %v826
      %844 = vmatprep.subr.bf16.mxu0 0
      %845 = vmatpush1.bf16.msra.mxu0 %v827
      %846 = vmatprep.subr.bf16.mxu0 0
      %847 = vmatpush1.bf16.msra.mxu0 %v828
      %848 = vmatprep.subr.bf16.mxu0 0
      %849 = vmatpush1.bf16.msra.mxu0 %v829
      %850 = vmatprep.subr.bf16.mxu0 0
      %851 = vmatpush1.bf16.msra.mxu0 %v830
      %852 = vmatprep.subr.bf16.mxu0 0
      %853 = vmatpush1.bf16.msra.mxu0 %v831
      %854 = vmatprep.subr.bf16.mxu0 0
      %855 = vmatpush1.bf16.msra.mxu0 %v832
      %856 = vmatprep.subr.bf16.mxu0 0
      %857 = vmatpush1.bf16.msra.mxu0 %v833
      %858 = vmatprep.subr.bf16.mxu0 0
      %859 = vmatpush1.bf16.msra.mxu0 0
      %860 = vmatprep.subr.bf16.mxu0 0
      %861 = vmatpush1.bf16.msra.mxu0 0
      %862 = vmatprep.subr.bf16.mxu0 0
      %863 = vmatpush1.bf16.msra.mxu0 0
      %864 = vmatprep.subr.bf16.mxu0 0
      %865 = vmatpush1.bf16.msra.mxu0 0
      %866 = vmatprep.subr.bf16.mxu0 0
      %867 = vmatpush1.bf16.msra.mxu0 0
      %868 = vmatprep.subr.bf16.mxu0 0
      %869 = vmatpush1.bf16.msra.mxu0 0
      %870 = vmatprep.subr.bf16.mxu0 0
      %871 = vmatpush1.bf16.msra.mxu0 0
      %872 = vmatprep.subr.bf16.mxu0 0
      %873 = vmatpush1.bf16.msra.mxu0 0
      %874 = vmatprep.mubr.bf16.mxu0 0
      %875 = vmatmul.mubr.bf16.gmra.mrb[0].mxu0 %v689
      %v876 = vpop.f32.mrb[0].mxu0
      %v877 = vadd.f32 %v787, %v876
      %v878 = vpop.f32.mrb[0].mxu0
      %v879 = vpop.f32.mrb[0].mxu0
      %v880 = vadd.f32 %v790, %v879
      %v881 = vpop.f32.mrb[0].mxu0
      %882 = vdwg.mxu0
      %v883 = vld [vmem:[#allocation3] sm:$0xe]
      %s884 = scalar_lea.vmem %s3, 128
      %v885 = vld [vmem:[%s884] sm:$0xf]
      %v886 = vld [vmem:[%s884 + $0x4] sm:$0xf]
      %v887 = vld [vmem:[%s884 + $0x8] sm:$0xf]
      %v888 = vld [vmem:[%s884 + $0xc] sm:$0xf]
      %v889 = vld [vmem:[%s884 + $0x10] sm:$0xf]
      %v890 = vld [vmem:[%s884 + $0x14] sm:$0xf]
      %v891 = vld [vmem:[%s884 + $0x18] sm:$0xf]
      %v892 = vld [vmem:[%s884 + $0x1c] sm:$0xf]
      %v893 = vld [vmem:[%s884 + $0x20] sm:$0xf]
      %v894 = vld [vmem:[%s884 + $0x24] sm:$0xf]
      %v895 = vld [vmem:[%s884 + $0x28] sm:$0xf]
      %v896 = vld [vmem:[%s884 + $0x2c] sm:$0xf]
      %v897 = vld [vmem:[%s884 + $0x30] sm:$0xf]
      %v898 = vld [vmem:[%s884 + $0x34] sm:$0xf]
      %v899 = vld [vmem:[%s884 + $0x38] sm:$0xf]
      %v900 = vld [vmem:[%s884 + $0x3c] sm:$0xf]
      %v902 = vunpack.c.l.b16 %v883
      %v903 = vpack.c.b16 %v687, %v902
      %v904 = vrot.slane %v903, 1
      %v905 = vrot.slane %v690, 1
      %v906 = vsel %vm518, %v904, %v905
      %v924 = vunpack.c.l.b16 %v885
      %v925 = vunpack.c.l.b16 %v886
      %v926 = vunpack.c.l.b16 %v887
      %v927 = vunpack.c.l.b16 %v888
      %v928 = vunpack.c.l.b16 %v889
      %v929 = vunpack.c.l.b16 %v890
      %v930 = vunpack.c.l.b16 %v891
      %v931 = vunpack.c.l.b16 %v892
      %v932 = vunpack.c.l.b16 %v893
      %v933 = vunpack.c.l.b16 %v894
      %v934 = vunpack.c.l.b16 %v895
      %v935 = vunpack.c.l.b16 %v896
      %v936 = vunpack.c.l.b16 %v897
      %v937 = vunpack.c.l.b16 %v898
      %v938 = vunpack.c.l.b16 %v899
      %v939 = vunpack.c.l.b16 %v900
      %v940 = vpack.c.b16 %v925, %v924
      %v941 = vpack.c.b16 %v927, %v926
      %v942 = vpack.c.b16 %v929, %v928
      %v943 = vpack.c.b16 %v931, %v930
      %v944 = vpack.c.b16 %v933, %v932
      %v945 = vpack.c.b16 %v935, %v934
      %v946 = vpack.c.b16 %v937, %v936
      %v947 = vpack.c.b16 %v939, %v938
      %956 = vmatprep.subr.bf16.mxu0 0
      %957 = vmatpush1.bf16.msra.mxu0 %v940
      %958 = vmatprep.subr.bf16.mxu0 0
      %959 = vmatpush1.bf16.msra.mxu0 %v941
      %960 = vmatprep.subr.bf16.mxu0 0
      %961 = vmatpush1.bf16.msra.mxu0 %v942
      %962 = vmatprep.subr.bf16.mxu0 0
      %963 = vmatpush1.bf16.msra.mxu0 %v943
      %964 = vmatprep.subr.bf16.mxu0 0
      %965 = vmatpush1.bf16.msra.mxu0 %v944
      %966 = vmatprep.subr.bf16.mxu0 0
      %967 = vmatpush1.bf16.msra.mxu0 %v945
      %968 = vmatprep.subr.bf16.mxu0 0
      %969 = vmatpush1.bf16.msra.mxu0 %v946
      %970 = vmatprep.subr.bf16.mxu0 0
      %971 = vmatpush1.bf16.msra.mxu0 %v947
      %972 = vmatprep.subr.bf16.mxu0 0
      %973 = vmatpush1.bf16.msra.mxu0 0
      %974 = vmatprep.subr.bf16.mxu0 0
      %975 = vmatpush1.bf16.msra.mxu0 0
      %976 = vmatprep.subr.bf16.mxu0 0
      %977 = vmatpush1.bf16.msra.mxu0 0
      %978 = vmatprep.subr.bf16.mxu0 0
      %979 = vmatpush1.bf16.msra.mxu0 0
      %980 = vmatprep.subr.bf16.mxu0 0
      %981 = vmatpush1.bf16.msra.mxu0 0
      %982 = vmatprep.subr.bf16.mxu0 0
      %983 = vmatpush1.bf16.msra.mxu0 0
      %984 = vmatprep.subr.bf16.mxu0 0
      %985 = vmatpush1.bf16.msra.mxu0 0
      %986 = vmatprep.subr.bf16.mxu0 0
      %987 = vmatpush1.bf16.msra.mxu0 0
      %988 = vmatprep.mubr.bf16.mxu0 0
      %989 = vmatmul.mubr.bf16.gmra.mrb[0].mxu0 %v906
      %v990 = vpop.f32.mrb[0].mxu0
      %v991 = vadd.f32 0.0, %v990
      %v992 = vpop.f32.mrb[0].mxu0
      %v993 = vpop.f32.mrb[0].mxu0
      %v994 = vadd.f32 0.0, %v993
      %v995 = vpop.f32.mrb[0].mxu0
      %996 = vdwg.mxu0
      %v997 = vadd.f32 %v877, %v991
      %v998 = vadd.f32 %v880, %v994
      %v999 = vld [vmem:[%s4] sm:$0x1]
      %v1001 = vlaneseq
      %v1002 = vshrl.u32 %v1001, 7
      %v1003 = vsub.s32 0, %v1002
      %v1004 = vrot.slane %v999, %v1003
      %v1006 = vadd.f32 %v997, %v1004
      %v1007 = vadd.f32 %v998, %v1004
      %vm1008 = vcmp.gt.f32.partialorder %v1006, 0.0
      %vm1009 = vcmp.gt.f32.partialorder %v1007, 0.0
      %v1010 = vmul.f32 %v1006, 0.01
      %v1011 = vmul.f32 %v1007, 0.01
      %v1012 = vsel %vm1008, %v1006, %v1010
      %v1013 = vsel %vm1009, %v1007, %v1011
      %v1014 = vld [vmem:[%s273] sm:$0xff]
      %v1015 = vld [vmem:[%s273 + $0x8] sm:$0xff]
      %v1016 = vpack.c.bf16 %v1015, %v1014
      %v1017 = vld [vmem:[%s5] sm:$0xf]
      %v1018 = vld [vmem:[%s5 + $0x4] sm:$0xf]
      %v1019 = vld [vmem:[%s5 + $0x8] sm:$0xf]
      %v1020 = vld [vmem:[%s5 + $0xc] sm:$0xf]
      %v1021 = vld [vmem:[%s5 + $0x10] sm:$0xf]
      %v1022 = vld [vmem:[%s5 + $0x14] sm:$0xf]
      %v1023 = vld [vmem:[%s5 + $0x18] sm:$0xf]
      %v1024 = vld [vmem:[%s5 + $0x1c] sm:$0xf]
      %v1025 = vld [vmem:[%s6] sm:$0x1]
      %v1027 = vlaneseq
      %v1028 = vshrl.u32 %v1027, 7
      %v1029 = vsub.s32 0, %v1028
      %v1030 = vrot.slane %v1025, %v1029
      %v1040 = vunpack.c.l.b16 %v1017
      %v1041 = vunpack.c.l.b16 %v1018
      %v1042 = vunpack.c.l.b16 %v1019
      %v1043 = vunpack.c.l.b16 %v1020
      %v1044 = vunpack.c.l.b16 %v1021
      %v1045 = vunpack.c.l.b16 %v1022
      %v1046 = vunpack.c.l.b16 %v1023
      %v1047 = vunpack.c.l.b16 %v1024
      %v1048 = vpack.c.b16 %v1041, %v1040
      %v1049 = vpack.c.b16 %v1043, %v1042
      %v1050 = vpack.c.b16 %v1045, %v1044
      %v1051 = vpack.c.b16 %v1047, %v1046
      %v1057 = vsel %vm393, %v1016, 0
      %1059 = vmatprep.subr.bf16.mxu0 0
      %1060 = vmatpush1.bf16.msra.mxu0 %v1048
      %1061 = vmatprep.subr.bf16.mxu0 0
      %1062 = vmatpush1.bf16.msra.mxu0 %v1049
      %1063 = vmatprep.subr.bf16.mxu0 0
      %1064 = vmatpush1.bf16.msra.mxu0 %v1050
      %1065 = vmatprep.subr.bf16.mxu0 0
      %1066 = vmatpush1.bf16.msra.mxu0 %v1051
      %1067 = vmatprep.subr.bf16.mxu0 0
      %1068 = vmatpush1.bf16.msra.mxu0 0
      %1069 = vmatprep.subr.bf16.mxu0 0
      %1070 = vmatpush1.bf16.msra.mxu0 0
      %1071 = vmatprep.subr.bf16.mxu0 0
      %1072 = vmatpush1.bf16.msra.mxu0 0
      %1073 = vmatprep.subr.bf16.mxu0 0
      %1074 = vmatpush1.bf16.msra.mxu0 0
      %1075 = vmatprep.subr.bf16.mxu0 0
      %1076 = vmatpush1.bf16.msra.mxu0 0
      %1077 = vmatprep.subr.bf16.mxu0 0
      %1078 = vmatpush1.bf16.msra.mxu0 0
      %1079 = vmatprep.subr.bf16.mxu0 0
      %1080 = vmatpush1.bf16.msra.mxu0 0
      %1081 = vmatprep.subr.bf16.mxu0 0
      %1082 = vmatpush1.bf16.msra.mxu0 0
      %1083 = vmatprep.subr.bf16.mxu0 0
      %1084 = vmatpush1.bf16.msra.mxu0 0
      %1085 = vmatprep.subr.bf16.mxu0 0
      %1086 = vmatpush1.bf16.msra.mxu0 0
      %1087 = vmatprep.subr.bf16.mxu0 0
      %1088 = vmatpush1.bf16.msra.mxu0 0
      %1089 = vmatprep.subr.bf16.mxu0 0
      %1090 = vmatpush1.bf16.msra.mxu0 0
      %1091 = vmatprep.mubr.bf16.mxu0 0
      %1092 = vmatmul.mubr.bf16.gmra.mrb[0].mxu0 %v1057
      %v1093 = vpop.f32.mrb[0].mxu0
      %v1094 = vadd.f32 %v1030, %v1093
      %v1095 = vpop.f32.mrb[0].mxu0
      %v1096 = vpop.f32.mrb[0].mxu0
      %v1097 = vadd.f32 %v1030, %v1096
      %v1098 = vpop.f32.mrb[0].mxu0
      %1099 = vdwg.mxu0
      %v1100 = vadd.f32 %v1012, %v1094
      %v1101 = vadd.f32 %v1013, %v1097
      %1102 = vst [vmem:[%s278] sm:$0xff] %v1100
      %1103 = vst [vmem:[%s278 + $0x8] sm:$0xff] %v1101
      %p1104 = scmp.lt.s32.totalorder %s18, 1
      %s1105 = scalar_select %p1104, %s18, 1
      %s1106 = smul.addr %s1105, 2
      %s1107 = smul.addr %s1106, 8
      %s1108 = scalar_lea.vmem %s7, %s1107
      // Predicated region
      $region49: #{_forward.1} parent=47 // pred_check
        %p1109 = pneg %p188
      $region50: #{_forward.1} parent=47 // pred_check_branch
        %1111 = sbr.rel (%p1109) target = $region52
      $region51: #{_forward.1} parent=47 // pred_region
        _
      $region52: #{_forward.1} parent=47 // pred_fallthru
        _
    $region48: #{_forward.1} parent=5 // pred_fallthru
      _
    %p1112 = scmp.le.s32.totalorder 2, %s13
    // Predicated region
    $region53: #{_forward.1} parent=5 // pred_check
      %p1113 = pneg %p1112
    $region54: #{_forward.1} parent=5 // pred_check_branch
      %1115 = sbr.rel (%p1113) target = $region56
    $region55: #{_forward.1} parent=5 // pred_region
      %s1116 = ssub.s32 %s13, 2
      // Predicated region
      $region57: #{_forward.1} parent=55 // pred_check
        %p1117 = pneg %p194
      $region58: #{_forward.1} parent=55 // pred_check_branch
        %1119 = sbr.rel (%p1117) target = $region60
      $region59: #{_forward.1} parent=55 // pred_region
        %p1120 = scmp.lt.s32.totalorder %s19, 1
        %s1121 = scalar_select %p1120, %s19, 1
        %s1122 = smul.addr %s1121, 2
        %s1123 = smul.addr %s1122, 8
        %s1124 = scalar_lea.vmem %s7, %s1123
      $region60: #{_forward.1} parent=55 // pred_fallthru
        _
    $region56: #{_forward.1} parent=5 // pred_fallthru
      _
  $region6: #{_forward.1} parent=0 // loop_footer
    %s17 = sadd.s32 1, %s13
  $region7: #{_forward.1} parent=0 // loop_footer_branch
    %12 = sbr.rel target = $region3
  $region8: #{_forward.1} parent=0 // loop_exit
    _

</llo_original>
